<compile_context>
chip_gen: v7x
topology: tpu7x:2x2x1
jax: 0.10.0
libtpu: 0.0.40
codegen_flags: <defaults>
</compile_context>

<pallas_src>
import jax
import jax.numpy as jnp
from jax.experimental import pallas as pl
from jax.experimental.pallas import tpu as pltpu

K_IN = 300        # 3 * 10 * 10 flattened conv input features
N_OC = 8          # conv output channels
N_OUT = 2         # linear output features
N_LANES = 8       # narrow lane width of the output / parameter slab
PB_ROWS = 16      # rows 0..7 = lin_w.T (padded to 8 lanes), 8 = lin_b, 9 = conv_b
ROW_LIN_B = 8
ROW_CONV_B = 9


def _round_up(a, m):
    return ((a + m - 1) // m) * m


def dummy_model_kernel(x_ref, w1_ref, pb_ref, o_ref):
    # Conv2d(3, 8, kernel_size=10) over a 10x10 input == dense (300 -> 8)
    # matmul.  MXU-native [M,K]x[K,N] layout, f32 operands + f32 accumulate.
    h = jnp.dot(x_ref[...], w1_ref[...],
                preferred_element_type=jnp.float32)                # (TB, 8)
    h = h + pb_ref[ROW_CONV_B:ROW_CONV_B + 1, :]                   # + conv bias
    h = jnp.maximum(h, 0.0)                                        # ReLU

    # Dropout: nn.Dropout() in eval mode is the identity.
    # TODO(synk): training-mode dropout (random mask + 1/(1-p) scaling) not implemented.

    # Linear(8 -> 2): second (tiny) MXU pass into the 8-lane slab; real
    # outputs live in lanes 0..1, bias row seeds lanes 0..1 only.
    out = jnp.dot(h, pb_ref[0:N_OC, :],
                  preferred_element_type=jnp.float32)              # (TB, 8)
    o_ref[...] = out + pb_ref[ROW_LIN_B:ROW_LIN_B + 1, :]


def _choose_tiling(B):
    """Batch tile size TB and padded batch B_pad (both multiples of 8)."""
    b8 = _round_up(max(B, 1), 8)
    if b8 <= 8:
        tb = 8                                   # too small to split
    elif b8 <= 4096:
        tb = _round_up((b8 + 1) // 2, 8)         # >= 2 grid steps (v7x megacore)
    else:
        tb = 2048                                # big tiles amortize per-step overhead
    return tb, _round_up(b8, tb)


def _prep_params(conv_w, conv_b, lin_w, lin_b):
    """Grid-invariant, MXU-friendly parameter layouts (tiny, built once)."""
    w1 = conv_w.reshape(N_OC, K_IN).T.astype(jnp.float32)          # (300, 8)
    pb = jnp.zeros((PB_ROWS, N_LANES), jnp.float32)
    pb = pb.at[:N_OC, :N_OUT].set(lin_w.T.astype(jnp.float32))     # rows 0..7
    pb = pb.at[ROW_LIN_B, :N_OUT].set(lin_b.astype(jnp.float32))   # row 8
    pb = pb.at[ROW_CONV_B, :N_OC].set(conv_b.astype(jnp.float32))  # row 9
    return w1, pb


def dummy_model_forward(x_nchw, conv_w, conv_b, lin_w, lin_b):
    """x_nchw: (B, 3, 10, 10) float32. Returns (B, 2) float32."""
    B = x_nchw.shape[0]
    TB, B_pad = _choose_tiling(B)

    # Free metadata reshape of the contiguous NCHW input; batch-pad only if needed.
    x_flat = x_nchw.reshape(B, K_IN).astype(jnp.float32)           # (B, 300)
    if B_pad != B:
        x_flat = jnp.pad(x_flat, ((0, B_pad - B), (0, 0)))

    w1, pb = _prep_params(conv_w, conv_b, lin_w, lin_b)

    grid = (B_pad // TB,)
    cost = pl.CostEstimate(
        flops=2 * B_pad * K_IN * N_OC + 2 * B_pad * N_OC * N_LANES,
        transcendentals=0,
        bytes_accessed=4 * (B_pad * K_IN + K_IN * N_OC
                            + PB_ROWS * N_LANES + B_pad * N_LANES),
    )

    out = pl.pallas_call(
        dummy_model_kernel,
        out_shape=jax.ShapeDtypeStruct((B_pad, N_LANES), jnp.float32),
        grid_spec=pltpu.PrefetchScalarGridSpec(
            num_scalar_prefetch=0,
            grid=grid,
            in_specs=[
                pl.BlockSpec((TB, K_IN), lambda i: (i, 0)),           # x tile
                pl.BlockSpec((K_IN, N_OC), lambda i: (0, 0)),         # w1 (resident)
                pl.BlockSpec((PB_ROWS, N_LANES), lambda i: (0, 0)),   # lin_w + biases
            ],
            out_specs=pl.BlockSpec((TB, N_LANES), lambda i: (i, 0)),
        ),
        compiler_params=pltpu.CompilerParams(
            dimension_semantics=("parallel",)),
        cost_estimate=cost,
    )(x_flat, w1, pb)

    return out[:B, :N_OUT]


if __name__ == "__main__":
    key = jax.random.PRNGKey(0)
    k_x, k_cw, k_cb, k_lw, k_lb = jax.random.split(key, 5)

    # Linear(8, 2) implies the conv output is (B, 8, 1, 1) => 10x10 input.
    B, C, H, W = 2, 3, 10, 10
    OC, K = 8, 10

    x = jax.random.normal(k_x, (B, C, H, W), dtype=jnp.float32)
    conv_w = jax.random.normal(k_cw, (OC, C, K, K), dtype=jnp.float32) * 0.05
    conv_b = jax.random.normal(k_cb, (OC,), dtype=jnp.float32) * 0.05
    lin_w = jax.random.normal(k_lw, (2, OC), dtype=jnp.float32) * 0.1
    lin_b = jax.random.normal(k_lb, (2,), dtype=jnp.float32) * 0.1

    out = dummy_model_forward(x, conv_w, conv_b, lin_w, lin_b)
    out = jax.block_until_ready(out)
    assert out.shape == (B, 2)

    # Reference: the original full-f32 module math (eval-mode dropout = identity).
    h_ref = jnp.maximum(x.reshape(B, -1) @ conv_w.reshape(OC, -1).T + conv_b, 0.0)
    ref = h_ref @ lin_w.T + lin_b
    assert jnp.allclose(out, ref, atol=1e-2, rtol=1e-2), (out, ref)

    print("KERNEL_OK")
</pallas_src>

<mosaic_0001>
module attributes {stable_mosaic.version = 11 : i64} {
  func.func @dummy_model_kernel(%arg0: i32, %arg1: memref<8x300xf32, #tpu.memory_space<vmem>>, %arg2: memref<300x8xf32, #tpu.memory_space<vmem>>, %arg3: memref<16x8xf32, #tpu.memory_space<vmem>>, %arg4: memref<8x8xf32, #tpu.memory_space<vmem>>) attributes {dimension_semantics = [#tpu.dimension_semantics<parallel>], iteration_bounds = array<i64: 1>, scalar_prefetch = 0 : i64, scratch_operands = 0 : i64, tpu.core_type = #tpu.core_type<tc>, window_params = [{transform_indices = @transform_0, window_bounds = array<i64: 8, 300>}, {pipeline_mode = #tpu.pipeline_mode<synchronous>, transform_indices = @transform_1, window_bounds = array<i64: 300, 8>}, {pipeline_mode = #tpu.pipeline_mode<synchronous>, transform_indices = @transform_2, window_bounds = array<i64: 16, 8>}, {transform_indices = @transform_3, window_bounds = array<i64: 8, 8>}]} {
    %c0 = arith.constant 0 : index
    %c0_0 = arith.constant 0 : index
    %0 = vector.load %arg1[%c0, %c0_0] : memref<8x300xf32, #tpu.memory_space<vmem>>, vector<8x300xf32>
    %c0_1 = arith.constant 0 : index
    %c0_2 = arith.constant 0 : index
    %1 = vector.load %arg2[%c0_1, %c0_2] : memref<300x8xf32, #tpu.memory_space<vmem>>, vector<300x8xf32>
    %cst = arith.constant dense<0.000000e+00> : vector<8x8xf32>
    %2 = tpu.matmul %0, %1, %cst {dimension_numbers = #tpu.dot_dimension_numbers<[1], [0], [0], [1], [0, 0, 1, 1], [], []>} : vector<8x300xf32>, vector<300x8xf32>, vector<8x8xf32> -> vector<8x8xf32>
    %c9 = arith.constant 9 : index
    %c0_3 = arith.constant 0 : index
    %3 = vector.load %arg3[%c9, %c0_3] : memref<16x8xf32, #tpu.memory_space<vmem>>, vector<1x8xf32>
    %4 = vector.broadcast %3 : vector<1x8xf32> to vector<8x8xf32>
    %5 = arith.addf %2, %4 : vector<8x8xf32>
    %cst_4 = arith.constant 0.000000e+00 : f32
    %6 = vector.broadcast %cst_4 : f32 to vector<8x8xf32>
    %7 = arith.maximumf %5, %6 : vector<8x8xf32>
    %c0_5 = arith.constant 0 : index
    %c0_6 = arith.constant 0 : index
    %8 = vector.load %arg3[%c0_5, %c0_6] : memref<16x8xf32, #tpu.memory_space<vmem>>, vector<8x8xf32>
    %cst_7 = arith.constant dense<0.000000e+00> : vector<8x8xf32>
    %9 = tpu.matmul %7, %8, %cst_7 {dimension_numbers = #tpu.dot_dimension_numbers<[1], [0], [0], [1], [0, 0, 1, 1], [], []>} : vector<8x8xf32>, vector<8x8xf32>, vector<8x8xf32> -> vector<8x8xf32>
    %c8 = arith.constant 8 : index
    %c0_8 = arith.constant 0 : index
    %10 = vector.load %arg3[%c8, %c0_8] : memref<16x8xf32, #tpu.memory_space<vmem>>, vector<1x8xf32>
    %11 = vector.broadcast %10 : vector<1x8xf32> to vector<8x8xf32>
    %12 = arith.addf %9, %11 : vector<8x8xf32>
    %c0_9 = arith.constant 0 : index
    %c0_10 = arith.constant 0 : index
    %13 = vector.load %arg4[%c0_9, %c0_10] : memref<8x8xf32, #tpu.memory_space<vmem>>, vector<8x8xf32>
    tpu.vector_store %arg4[%c0_9, %c0_10], %12 {strides = array<i32>} : memref<8x8xf32, #tpu.memory_space<vmem>>, vector<8x8xf32>,
    return
  }
  func.func @transform_0(%arg0: i32) -> (i32, i32) {
    %c0_i32 = arith.constant 0 : i32
    %c0_i32_0 = arith.constant 0 : i32
    return %arg0, %c0_i32 : i32, i32
  }
  func.func @transform_1(%arg0: i32) -> (i32, i32) {
    %c0_i32 = arith.constant 0 : i32
    %c0_i32_0 = arith.constant 0 : i32
    %c0_i32_1 = arith.constant 0 : i32
    return %c0_i32, %c0_i32_0 : i32, i32
  }
  func.func @transform_2(%arg0: i32) -> (i32, i32) {
    %c0_i32 = arith.constant 0 : i32
    %c0_i32_0 = arith.constant 0 : i32
    %c0_i32_1 = arith.constant 0 : i32
    return %c0_i32, %c0_i32_0 : i32, i32
  }
  func.func @transform_3(%arg0: i32) -> (i32, i32) {
    %c0_i32 = arith.constant 0 : i32
    %c0_i32_0 = arith.constant 0 : i32
    return %arg0, %c0_i32 : i32, i32
  }
}

</mosaic_0001>

<llo_original>
// kernel: tpu_custom_call.1
$region0: #{tpu_custom_call.1}
  #allocation0 [shape = 'u32[]', space=smem, size = 0x4, offset = 0x4, fixed_abs, tag = 'smem constant byte address 0x4 - core index']
  #allocation1 [shape = 'u32[144,128]{1,0:T(1,128)}', space=vmem, size = 0x12000, scoped, tag = 'internal scratch']
  %s0 = inlined_call_operand.vmem [shape: f32[8,300], index: 0, kind: input, shape index: {}]
  %s1 = inlined_call_operand.vmem [shape: f32[300,8], index: 1, kind: input, shape index: {}]
  %s2 = inlined_call_operand.vmem [shape: f32[16,8], index: 2, kind: input, shape index: {}]
  %s3 = inlined_call_operand.hbm [shape: f32[8,8], index: 3, kind: output, shape index: {}]
  %s4 = sld [smem:[#allocation0]]
  $region22: #{tpu_custom_call.1} parent=0
    _
  %s6 = ssub.s32 1, %s4
  %s7 = scalar_select 0, %s6, %s4
  $region1: #{tpu_custom_call.1} parent=0
    #allocation2 [shape = 'u8[4096]{0}', space=vmem, size = 0x1000, scoped, tag = 'output window, operand 0, single buffered']
    #allocation3 [shape = 's32[1]{0}', space=sflag, size = 0x4, scoped, tag = 'scoped memory for tpu_custom_call.1']
    %8 = vsyncpa [#allocation3], 0
    // Predicated region
    $region2: #{tpu_custom_call.1} parent=1 // pred_check
      _
    $region3: #{tpu_custom_call.1} parent=1 // pred_check_branch
      %10 = sbr.rel (0) target = $region5
    $region4: #{tpu_custom_call.1} parent=1 // pred_region
      _
    $region5: #{tpu_custom_call.1} parent=1 // pred_fallthru
      _
    // Predicated region
    $region6: #{tpu_custom_call.1} parent=1 // pred_check
      _
    $region7: #{tpu_custom_call.1} parent=1 // pred_check_branch
      %12 = sbr.rel (0) target = $region9
    $region8: #{tpu_custom_call.1} parent=1 // pred_region
      _
    $region9: #{tpu_custom_call.1} parent=1 // pred_fallthru
      _
    // Predicated region
    $region10: #{tpu_custom_call.1} parent=1 // pred_check
      _
    $region11: #{tpu_custom_call.1} parent=1 // pred_check_branch
      %14 = sbr.rel (0) target = $region13
    $region12: #{tpu_custom_call.1} parent=1 // pred_region
      _
    $region13: #{tpu_custom_call.1} parent=1 // pred_fallthru
      _
    %v15 = vld [vmem:[%s0] sm:$0xff]
    %v16 = vld [vmem:[%s0 + $0x8] sm:$0xff]
    %v17 = vld [vmem:[%s0 + $0x10] sm:$0xff]
    %v18 = vld [vmem:[%s1] sm:$0xff]
    %v19 = vld [vmem:[%s1 + $0x8] sm:$0xff]
    %v20 = vld [vmem:[%s1 + $0x10] sm:$0xff]
    %v21 = vld [vmem:[%s1 + $0x18] sm:$0xff]
    %v22 = vld [vmem:[%s1 + $0x20] sm:$0xff]
    %v23 = vld [vmem:[%s1 + $0x28] sm:$0xff]
    %v24 = vld [vmem:[%s1 + $0x30] sm:$0xff]
    %v25 = vld [vmem:[%s1 + $0x38] sm:$0xff]
    %v26 = vld [vmem:[%s1 + $0x40] sm:$0xff]
    %v27 = vld [vmem:[%s1 + $0x48] sm:$0xff]
    %v28 = vld [vmem:[%s1 + $0x50] sm:$0xff]
    %v29 = vld [vmem:[%s1 + $0x58] sm:$0xff]
    %v30 = vld [vmem:[%s1 + $0x60] sm:$0xff]
    %v31 = vld [vmem:[%s1 + $0x68] sm:$0xff]
    %v32 = vld [vmem:[%s1 + $0x70] sm:$0xff]
    %v33 = vld [vmem:[%s1 + $0x78] sm:$0xff]
    %v34 = vld [vmem:[%s1 + $0x80] sm:$0xff]
    %v35 = vld [vmem:[%s1 + $0x88] sm:$0xff]
    %v36 = vld [vmem:[%s1 + $0x90] sm:$0xff]
    %v37 = vld [vmem:[%s1 + $0x98] sm:$0xff]
    %v38 = vld [vmem:[%s1 + $0xa0] sm:$0xff]
    %v39 = vld [vmem:[%s1 + $0xa8] sm:$0xff]
    %v40 = vld [vmem:[%s1 + $0xb0] sm:$0xff]
    %v41 = vld [vmem:[%s1 + $0xb8] sm:$0xff]
    %v42 = vld [vmem:[%s1 + $0xc0] sm:$0xff]
    %v43 = vld [vmem:[%s1 + $0xc8] sm:$0xff]
    %v44 = vld [vmem:[%s1 + $0xd0] sm:$0xff]
    %v45 = vld [vmem:[%s1 + $0xd8] sm:$0xff]
    %v46 = vld [vmem:[%s1 + $0xe0] sm:$0xff]
    %v47 = vld [vmem:[%s1 + $0xe8] sm:$0xff]
    %v48 = vld [vmem:[%s1 + $0xf0] sm:$0xff]
    %v49 = vld [vmem:[%s1 + $0xf8] sm:$0xff]
    %v50 = vld [vmem:[%s1 + $0x100] sm:$0xff]
    %v51 = vld [vmem:[%s1 + $0x108] sm:$0xff]
    %v52 = vld [vmem:[%s1 + $0x110] sm:$0xff]
    %v53 = vld [vmem:[%s1 + $0x118] sm:$0xff]
    %v54 = vld [vmem:[%s1 + $0x120] sm:$0xff]
    %v55 = vld [vmem:[%s1 + $0x128] sm:$0xf]
    %v56 = vld [vmem:[%s2 + $0x9] sm:$0x1]
    %v57 = vlaneseq
    %v58 = vshrl.u32 %v57, 7
    %v59 = vsub.s32 0, %v58
    %v60 = vrot.slane %v56, %v59
    %vm61 = vcmask 359424
    %v63 = vsel %vm61, %v17, 0
    %vm65 = vcmask 1043456
    %v67 = vsel %vm65, %v55, 0
    %69 = vmatprep.subr.mxu0 0.0
    %70 = vmatpush1.msra.mxu0 %v18
    %71 = vmatprep.subr.mxu0 0.0
    %72 = vmatpush1.msra.mxu0 %v19
    %73 = vmatprep.subr.mxu0 0.0
    %74 = vmatpush1.msra.mxu0 %v20
    %75 = vmatprep.subr.mxu0 0.0
    %76 = vmatpush1.msra.mxu0 %v21
    %77 = vmatprep.subr.mxu0 0.0
    %78 = vmatpush1.msra.mxu0 %v22
    %79 = vmatprep.subr.mxu0 0.0
    %80 = vmatpush1.msra.mxu0 %v23
    %81 = vmatprep.subr.mxu0 0.0
    %82 = vmatpush1.msra.mxu0 %v24
    %83 = vmatprep.subr.mxu0 0.0
    %84 = vmatpush1.msra.mxu0 %v25
    %85 = vmatprep.subr.mxu0 0.0
    %86 = vmatpush1.msra.mxu0 %v26
    %87 = vmatprep.subr.mxu0 0.0
    %88 = vmatpush1.msra.mxu0 %v27
    %89 = vmatprep.subr.mxu0 0.0
    %90 = vmatpush1.msra.mxu0 %v28
    %91 = vmatprep.subr.mxu0 0.0
    %92 = vmatpush1.msra.mxu0 %v29
    %93 = vmatprep.subr.mxu0 0.0
    %94 = vmatpush1.msra.mxu0 %v30
    %95 = vmatprep.subr.mxu0 0.0
    %96 = vmatpush1.msra.mxu0 %v31
    %97 = vmatprep.subr.mxu0 0.0
    %98 = vmatpush1.msra.mxu0 %v32
    %99 = vmatprep.subr.mxu0 0.0
    %100 = vmatpush1.msra.mxu0 %v33
    %101 = vmatprep.subr.mxu0 0.0
    %102 = vmatpush1.msra.mxu0 %v34
    %103 = vmatprep.subr.mxu0 0.0
    %104 = vmatpush1.msra.mxu0 %v35
    %105 = vmatprep.subr.mxu0 0.0
    %106 = vmatpush1.msra.mxu0 %v36
    %107 = vmatprep.subr.mxu0 0.0
    %108 = vmatpush1.msra.mxu0 %v37
    %109 = vmatprep.subr.mxu0 0.0
    %110 = vmatpush1.msra.mxu0 %v38
    %111 = vmatprep.subr.mxu0 0.0
    %112 = vmatpush1.msra.mxu0 %v39
    %113 = vmatprep.subr.mxu0 0.0
    %114 = vmatpush1.msra.mxu0 %v40
    %115 = vmatprep.subr.mxu0 0.0
    %116 = vmatpush1.msra.mxu0 %v41
    %117 = vmatprep.subr.mxu0 0.0
    %118 = vmatpush1.msra.mxu0 %v42
    %119 = vmatprep.subr.mxu0 0.0
    %120 = vmatpush1.msra.mxu0 %v43
    %121 = vmatprep.subr.mxu0 0.0
    %122 = vmatpush1.msra.mxu0 %v44
    %123 = vmatprep.subr.mxu0 0.0
    %124 = vmatpush1.msra.mxu0 %v45
    %125 = vmatprep.subr.mxu0 0.0
    %126 = vmatpush1.msra.mxu0 %v46
    %127 = vmatprep.subr.mxu0 0.0
    %128 = vmatpush1.msra.mxu0 %v47
    %129 = vmatprep.subr.mxu0 0.0
    %130 = vmatpush1.msra.mxu0 %v48
    %131 = vmatprep.subr.mxu0 0.0
    %132 = vmatpush1.msra.mxu0 %v49
    %133 = vmatprep.mubr.f32.mxu0 %v16
    %134 = vmatmul.mubr.f32.gmra.mrb[0].mxu0 %v15
    %v135 = vpop.f32.mrb[0].mxu0
    %v136 = vadd.f32 %v60, %v135
    %v137 = vpop.f32.mrb[0].mxu0
    %138 = vdwg.mxu0
    %139 = vmatprep.subr.mxu0 0.0
    %140 = vmatpush1.msra.mxu0 %v50
    %141 = vmatprep.subr.mxu0 0.0
    %142 = vmatpush1.msra.mxu0 %v51
    %143 = vmatprep.subr.mxu0 0.0
    %144 = vmatpush1.msra.mxu0 %v52
    %145 = vmatprep.subr.mxu0 0.0
    %146 = vmatpush1.msra.mxu0 %v53
    %147 = vmatprep.subr.mxu0 0.0
    %148 = vmatpush1.msra.mxu0 %v54
    %149 = vmatprep.subr.mxu0 0.0
    %150 = vmatpush1.msra.mxu0 %v67
    %151 = vmatprep.subr.mxu0 0.0
    %152 = vmatpush1.msra.mxu0 0.0
    %153 = vmatprep.subr.mxu0 0.0
    %154 = vmatpush1.msra.mxu0 0.0
    %155 = vmatprep.subr.mxu0 0.0
    %156 = vmatpush1.msra.mxu0 0.0
    %157 = vmatprep.subr.mxu0 0.0
    %158 = vmatpush1.msra.mxu0 0.0
    %159 = vmatprep.subr.mxu0 0.0
    %160 = vmatpush1.msra.mxu0 0.0
    %161 = vmatprep.subr.mxu0 0.0
    %162 = vmatpush1.msra.mxu0 0.0
    %163 = vmatprep.subr.mxu0 0.0
    %164 = vmatpush1.msra.mxu0 0.0
    %165 = vmatprep.subr.mxu0 0.0
    %166 = vmatpush1.msra.mxu0 0.0
    %167 = vmatprep.subr.mxu0 0.0
    %168 = vmatpush1.msra.mxu0 0.0
    %169 = vmatprep.subr.mxu0 0.0
    %170 = vmatpush1.msra.mxu0 0.0
    %171 = vmatprep.subr.mxu0 0.0
    %172 = vmatpush1.msra.mxu0 0.0
    %173 = vmatprep.subr.mxu0 0.0
    %174 = vmatpush1.msra.mxu0 0.0
    %175 = vmatprep.subr.mxu0 0.0
    %176 = vmatpush1.msra.mxu0 0.0
    %177 = vmatprep.subr.mxu0 0.0
    %178 = vmatpush1.msra.mxu0 0.0
    %179 = vmatprep.subr.mxu0 0.0
    %180 = vmatpush1.msra.mxu0 0.0
    %181 = vmatprep.subr.mxu0 0.0
    %182 = vmatpush1.msra.mxu0 0.0
    %183 = vmatprep.subr.mxu0 0.0
    %184 = vmatpush1.msra.mxu0 0.0
    %185 = vmatprep.subr.mxu0 0.0
    %186 = vmatpush1.msra.mxu0 0.0
    %187 = vmatprep.subr.mxu0 0.0
    %188 = vmatpush1.msra.mxu0 0.0
    %189 = vmatprep.subr.mxu0 0.0
    %190 = vmatpush1.msra.mxu0 0.0
    %191 = vmatprep.subr.mxu0 0.0
    %192 = vmatpush1.msra.mxu0 0.0
    %193 = vmatprep.subr.mxu0 0.0
    %194 = vmatpush1.msra.mxu0 0.0
    %195 = vmatprep.subr.mxu0 0.0
    %196 = vmatpush1.msra.mxu0 0.0
    %197 = vmatprep.subr.mxu0 0.0
    %198 = vmatpush1.msra.mxu0 0.0
    %199 = vmatprep.subr.mxu0 0.0
    %200 = vmatpush1.msra.mxu0 0.0
    %201 = vmatprep.subr.mxu0 0.0
    %202 = vmatpush1.msra.mxu0 0.0
    %203 = vmatprep.mubr.f32.mxu0 0.0
    %204 = vmatmul.mubr.f32.gmra.mrb[0].mxu0 %v63
    %v205 = vpop.f32.mrb[0].mxu0
    %v206 = vadd.f32 %v136, %v205
    %v207 = vpop.f32.mrb[0].mxu0
    %208 = vdwg.mxu0
    %v209 = vmax.f32 %v206, 0.0
    %v210 = vld [vmem:[%s2] sm:$0xff]
    %v211 = vld [vmem:[%s2 + $0x8] sm:$0x1]
    %v212 = vlaneseq
    %v213 = vshrl.u32 %v212, 7
    %v214 = vsub.s32 0, %v213
    %v215 = vrot.slane %v211, %v214
    %vm216 = vcmask 64512
    %v218 = vsel %vm216, %v209, 0
    %220 = vmatprep.subr.mxu0 0.0
    %221 = vmatpush1.msra.mxu0 %v210
    %222 = vmatprep.subr.mxu0 0.0
    %223 = vmatpush1.msra.mxu0 0.0
    %224 = vmatprep.subr.mxu0 0.0
    %225 = vmatpush1.msra.mxu0 0.0
    %226 = vmatprep.subr.mxu0 0.0
    %227 = vmatpush1.msra.mxu0 0.0
    %228 = vmatprep.subr.mxu0 0.0
    %229 = vmatpush1.msra.mxu0 0.0
    %230 = vmatprep.subr.mxu0 0.0
    %231 = vmatpush1.msra.mxu0 0.0
    %232 = vmatprep.subr.mxu0 0.0
    %233 = vmatpush1.msra.mxu0 0.0
    %234 = vmatprep.subr.mxu0 0.0
    %235 = vmatpush1.msra.mxu0 0.0
    %236 = vmatprep.subr.mxu0 0.0
    %237 = vmatpush1.msra.mxu0 0.0
    %238 = vmatprep.subr.mxu0 0.0
    %239 = vmatpush1.msra.mxu0 0.0
    %240 = vmatprep.subr.mxu0 0.0
    %241 = vmatpush1.msra.mxu0 0.0
    %242 = vmatprep.subr.mxu0 0.0
    %243 = vmatpush1.msra.mxu0 0.0
    %244 = vmatprep.subr.mxu0 0.0
    %245 = vmatpush1.msra.mxu0 0.0
    %246 = vmatprep.subr.mxu0 0.0
    %247 = vmatpush1.msra.mxu0 0.0
    %248 = vmatprep.subr.mxu0 0.0
    %249 = vmatpush1.msra.mxu0 0.0
    %250 = vmatprep.subr.mxu0 0.0
    %251 = vmatpush1.msra.mxu0 0.0
    %252 = vmatprep.subr.mxu0 0.0
    %253 = vmatpush1.msra.mxu0 0.0
    %254 = vmatprep.subr.mxu0 0.0
    %255 = vmatpush1.msra.mxu0 0.0
    %256 = vmatprep.subr.mxu0 0.0
    %257 = vmatpush1.msra.mxu0 0.0
    %258 = vmatprep.subr.mxu0 0.0
    %259 = vmatpush1.msra.mxu0 0.0
    %260 = vmatprep.subr.mxu0 0.0
    %261 = vmatpush1.msra.mxu0 0.0
    %262 = vmatprep.subr.mxu0 0.0
    %263 = vmatpush1.msra.mxu0 0.0
    %264 = vmatprep.subr.mxu0 0.0
    %265 = vmatpush1.msra.mxu0 0.0
    %266 = vmatprep.subr.mxu0 0.0
    %267 = vmatpush1.msra.mxu0 0.0
    %268 = vmatprep.subr.mxu0 0.0
    %269 = vmatpush1.msra.mxu0 0.0
    %270 = vmatprep.subr.mxu0 0.0
    %271 = vmatpush1.msra.mxu0 0.0
    %272 = vmatprep.subr.mxu0 0.0
    %273 = vmatpush1.msra.mxu0 0.0
    %274 = vmatprep.subr.mxu0 0.0
    %275 = vmatpush1.msra.mxu0 0.0
    %276 = vmatprep.subr.mxu0 0.0
    %277 = vmatpush1.msra.mxu0 0.0
    %278 = vmatprep.subr.mxu0 0.0
    %279 = vmatpush1.msra.mxu0 0.0
    %280 = vmatprep.subr.mxu0 0.0
    %281 = vmatpush1.msra.mxu0 0.0
    %282 = vmatprep.subr.mxu0 0.0
    %283 = vmatpush1.msra.mxu0 0.0
    %284 = vmatprep.mubr.f32.mxu0 0.0
    %285 = vmatmul.mubr.f32.gmra.mrb[0].mxu0 %v218
    %v286 = vpop.f32.mrb[0].mxu0
    %v287 = vadd.f32 %v215, %v286
    %v288 = vpop.f32.mrb[0].mxu0
    %289 = vdwg.mxu0
    %290 = vst.msk [vmem:[#allocation2] sm:$0xff] %vm216, %v287
    // Predicated region
    $region14: #{tpu_custom_call.1} parent=1 // pred_check
      _
    $region15: #{tpu_custom_call.1} parent=1 // pred_check_branch
      %292 = sbr.rel (0) target = $region17
    $region16: #{tpu_custom_call.1} parent=1 // pred_region
      %s294 = ssub.s32 128, 128
      %295 = vsyncadd [#allocation3], %s294
      %s297 = sshll.u32 [#allocation2], 4
      %s298 = int_to_ptr.vmem [resolvable:$true] %s297
      %300 = dma.vmem_to_hbm [thread:$0]  %s298, 128, %s3, [#allocation3]
    $region17: #{tpu_custom_call.1} parent=1 // pred_fallthru
      _
    // Predicated region
    $region18: #{tpu_custom_call.1} parent=1 // pred_check
      _
    $region19: #{tpu_custom_call.1} parent=1 // pred_check_branch
      %302 = sbr.rel (0) target = $region21
    $region20: #{tpu_custom_call.1} parent=1 // pred_region
      %303 = dma.done [#allocation3], 128
    $region21: #{tpu_custom_call.1} parent=1 // pred_fallthru
      _
    %304 = vsyncpa [#allocation3], 1

</llo_original>
